<compile_context>
chip_gen: v5e
topology: v5e:2x2
jax: 0.10.0
libtpu: 0.0.40
codegen_flags: <defaults>
</compile_context>

<pallas_src>
import jax
import jax.numpy as jnp
from jax.experimental import pallas as pl
from jax.experimental.pallas import tpu as pltpu


# ------------------------------ kernels ------------------------------------

def _atomwise_linear_small_kernel(x_ref, w_ref, b_ref, o_ref):
    # Whole problem resident in VMEM: (N, F_in) @ (F_in, F_out) + (1, F_out)
    acc = jnp.dot(x_ref[...], w_ref[...], preferred_element_type=jnp.float32)
    o_ref[...] = (acc + b_ref[...].astype(jnp.float32)).astype(o_ref.dtype)


def _atomwise_linear_t_kernel(xt_ref, wt_ref, b_ref, ot_ref):
    # Transposed / lane-dense tile: (F_out, F_in) @ (F_in, TN) + (F_out, 1)
    # Atoms live on the lane axis -> unmasked, full-width vector stores.
    acc = jnp.dot(wt_ref[...], xt_ref[...], preferred_element_type=jnp.float32)
    ot_ref[...] = (acc + b_ref[...].astype(jnp.float32)).astype(ot_ref.dtype)


# ------------------------------ wrapper -------------------------------------

def _round_up(x: int, m: int) -> int:
    return ((x + m - 1) // m) * m


def atomwise_linear(
    x,
    w,
    b,
    *,
    storage_dtype=None,
    small_threshold_atoms: int = 512,
    max_tile_atoms: int = 8192,
    tile_vmem_budget_bytes: int = 16 * 1024 * 1024,
):
    """Apply y = x @ w + b row-wise over atoms with Pallas kernels.

    x: [N, F_in], w: [F_in, F_out], b: [F_out] (or [1, F_out]) -> [N, F_out]
    """
    out_dtype = x.dtype
    n, f_in = x.shape
    f_out = w.shape[1]
    b = jnp.asarray(b).reshape(1, f_out)

    if storage_dtype is not None:
        # HBM-resident tensors in a narrower dtype; MXU still accumulates f32.
        x = x.astype(storage_dtype)
        w = w.astype(storage_dtype)
        b = b.astype(storage_dtype)

    # ---- small path: whole problem fits comfortably in VMEM -> gridless call,
    #      no pipeline, no per-grid-step overhead.
    if n <= small_threshold_atoms:
        return pl.pallas_call(
            _atomwise_linear_small_kernel,
            out_shape=jax.ShapeDtypeStruct((n, f_out), out_dtype),
            in_specs=[
                pl.BlockSpec(memory_space=pltpu.MemorySpace.VMEM),
                pl.BlockSpec(memory_space=pltpu.MemorySpace.VMEM),
                pl.BlockSpec(memory_space=pltpu.MemorySpace.VMEM),
            ],
            out_specs=pl.BlockSpec(memory_space=pltpu.MemorySpace.VMEM),
        )(x, w, b)

    # ---- large path: transposed, lane-dense, tiled over atoms.
    xt = x.T                  # [F_in, N]      (wrapper-side layout plumbing)
    wt = w.T                  # [F_out, F_in]
    bt = b.reshape(f_out, 1)  # [F_out, 1]

    in_itemsize = jnp.dtype(xt.dtype).itemsize
    out_itemsize = jnp.dtype(out_dtype).itemsize
    # Per atom column of a tile: double-buffered input + double-buffered output.
    bytes_per_atom = 2 * (f_in * in_itemsize + f_out * out_itemsize)
    tile_atoms = min(max_tile_atoms, tile_vmem_budget_bytes // max(bytes_per_atom, 1))
    # Keep >= 2 grid steps when the problem allows it (feeds both TCs on v7x).
    if n > 2 * 128:
        tile_atoms = min(tile_atoms, _round_up(pl.cdiv(n, 2), 128))
    tile_atoms = max(128, (tile_atoms // 128) * 128)  # lane-dense & bf16-safe

    n_pad = _round_up(n, tile_atoms)
    if n_pad != n:
        xt = jnp.pad(xt, ((0, 0), (0, n_pad - n)))
    grid = (n_pad // tile_atoms,)

    # Alias the (temporary) transposed-input buffer onto the output when legal:
    # AtomwiseOperation overwrites data[out_field] in place anyway.
    io_aliases = {}
    if f_in == f_out and xt.dtype == jnp.dtype(out_dtype):
        io_aliases = {0: 0}

    yt = pl.pallas_call(
        _atomwise_linear_t_kernel,
        out_shape=jax.ShapeDtypeStruct((f_out, n_pad), out_dtype),
        grid_spec=pltpu.PrefetchScalarGridSpec(
            num_scalar_prefetch=0,
            grid=grid,
            in_specs=[
                pl.BlockSpec((f_in, tile_atoms), lambda i: (0, i)),  # atom tile (lanes)
                pl.BlockSpec((f_out, f_in), lambda i: (0, 0)),       # full weight
                pl.BlockSpec((f_out, 1), lambda i: (0, 0)),          # bias column
            ],
            out_specs=pl.BlockSpec((f_out, tile_atoms), lambda i: (0, i)),
        ),
        compiler_params=pltpu.CompilerParams(
            dimension_semantics=("parallel",),
            vmem_limit_bytes=32 * 1024 * 1024,  # safe scoped budget on v5e/v6e/v7x
        ),
        input_output_aliases=io_aliases,
    )(xt, wt, bt)

    return yt[:, :n].T


class AtomwiseOperationPallas:
    """Mirror of nequip's AtomwiseOperation: data[out_field] = op(data[out_field]).

    `operation` here is a deterministic scalar-irreps linear map run in Pallas.
    """

    def __init__(self, out_field: str, f_in: int, f_out: int, *, storage_dtype=None):
        self.out_field = out_field
        self.storage_dtype = storage_dtype
        # deterministic parameter init (synthetic, not a checkpoint load)
        kw, kb = jax.random.split(jax.random.PRNGKey(42))
        self.weight = (jax.random.normal(kw, (f_in, f_out), jnp.float32)
                       / jnp.sqrt(jnp.float32(f_in)))
        self.bias = 0.01 * jax.random.normal(kb, (f_out,), jnp.float32)

    def __call__(self, data: dict) -> dict:
        data = dict(data)  # shallow copy, like mutating the AtomicDataDict
        data[self.out_field] = atomwise_linear(
            data[self.out_field],
            self.weight,
            self.bias,
            storage_dtype=self.storage_dtype,
        )
        return data


if __name__ == "__main__":
    F_IN, F_OUT = 32, 32
    key = jax.random.PRNGKey(0)
    k_small, k_large = jax.random.split(key)

    module = AtomwiseOperationPallas("node_features", F_IN, F_OUT)
    w, b = module.weight, module.bias

    # 1) small molecule (16 atoms): gridless single-shot path
    x_small = jax.random.normal(k_small, (16, F_IN), jnp.float32)
    out_small = jax.block_until_ready(
        module({"node_features": x_small})["node_features"])
    ref_small = x_small @ w + b[None, :]
    assert out_small.shape == (16, F_OUT)
    assert jnp.allclose(out_small, ref_small, atol=1e-5, rtol=1e-5)

    # 2) larger, non-tile-multiple atom count: tiled lane-dense path (2 grid steps,
    #    padded from 777 to 1024 atoms, output sliced back)
    x_large = jax.random.normal(k_large, (777, F_IN), jnp.float32)
    out_large = jax.block_until_ready(
        module({"node_features": x_large})["node_features"])
    ref_large = x_large @ w + b[None, :]
    assert out_large.shape == (777, F_OUT)
    assert jnp.allclose(out_large, ref_large, atol=1e-4, rtol=1e-4)

    # 3) bf16 HBM storage, f32 MXU accumulation (bandwidth-bound -> ~2x traffic win)
    module_bf16 = AtomwiseOperationPallas("node_features", F_IN, F_OUT,
                                          storage_dtype=jnp.bfloat16)
    out_bf16 = jax.block_until_ready(
        module_bf16({"node_features": x_large})["node_features"])
    ref_bf16 = x_large @ module_bf16.weight + module_bf16.bias[None, :]
    assert out_bf16.shape == (777, F_OUT)
    assert jnp.allclose(out_bf16, ref_bf16, atol=1e-1, rtol=1e-1)

    print("KERNEL_OK")
</pallas_src>

<mosaic_0001>
module attributes {stable_mosaic.version = 11 : i64} {
  func.func @_atomwise_linear_small_kernel(%arg0: memref<16x32xf32, #tpu.memory_space<vmem>>, %arg1: memref<32x32xf32, #tpu.memory_space<vmem>>, %arg2: memref<1x32xf32, #tpu.memory_space<vmem>>, %arg3: memref<16x32xf32, #tpu.memory_space<vmem>>) attributes {dimension_semantics = [], scalar_prefetch = 0 : i64, scratch_operands = 0 : i64, tpu.core_type = #tpu.core_type<tc>} {
    %c0 = arith.constant 0 : index
    %c0_0 = arith.constant 0 : index
    %0 = vector.load %arg0[%c0, %c0_0] : memref<16x32xf32, #tpu.memory_space<vmem>>, vector<16x32xf32>
    %c0_1 = arith.constant 0 : index
    %c0_2 = arith.constant 0 : index
    %1 = vector.load %arg1[%c0_1, %c0_2] : memref<32x32xf32, #tpu.memory_space<vmem>>, vector<32x32xf32>
    %cst = arith.constant dense<0.000000e+00> : vector<16x32xf32>
    %2 = tpu.matmul %0, %1, %cst {dimension_numbers = #tpu.dot_dimension_numbers<[1], [0], [0], [1], [0, 0, 1, 1], [], []>} : vector<16x32xf32>, vector<32x32xf32>, vector<16x32xf32> -> vector<16x32xf32>
    %c0_3 = arith.constant 0 : index
    %c0_4 = arith.constant 0 : index
    %3 = vector.load %arg2[%c0_3, %c0_4] : memref<1x32xf32, #tpu.memory_space<vmem>>, vector<1x32xf32>
    %4 = vector.broadcast %3 : vector<1x32xf32> to vector<16x32xf32>
    %5 = arith.addf %2, %4 : vector<16x32xf32>
    %c0_5 = arith.constant 0 : index
    %c0_6 = arith.constant 0 : index
    %6 = vector.load %arg3[%c0_5, %c0_6] : memref<16x32xf32, #tpu.memory_space<vmem>>, vector<16x32xf32>
    tpu.vector_store %arg3[%c0_5, %c0_6], %5 {strides = array<i32>} : memref<16x32xf32, #tpu.memory_space<vmem>>, vector<16x32xf32>,
    return
  }
}

</mosaic_0001>

<llo_original>
// kernel: tpu_custom_call.1
$region0: #{tpu_custom_call.1}
  #allocation0 [shape = 'u32[]', space=smem, size = 0x4, offset = 0x4, fixed_abs, tag = 'smem constant byte address 0x4 - core index']
  #allocation1 [shape = 'u32[72,128]{1,0:T(1,128)}', space=vmem, size = 0x9000, scoped, tag = 'internal scratch']
  %s0 = inlined_call_operand.hbm [shape: f32[16,32], index: 0, kind: input, shape index: {}]
  %s1 = inlined_call_operand.hbm [shape: f32[32,32], index: 1, kind: input, shape index: {}]
  %s2 = inlined_call_operand.vmem [shape: f32[1,32], index: 2, kind: input, shape index: {}]
  %s3 = inlined_call_operand.hbm [shape: f32[16,32], index: 3, kind: output, shape index: {}]
  %s4 = sld [smem:[#allocation0]]
  $region30: #{tpu_custom_call.1} parent=0
    _
  %s6 = ssub.s32 1, %s4
  %s7 = scalar_select 0, %s6, %s4
  $region1: #{tpu_custom_call.1} parent=0
    #allocation2 [shape = 'u8[8192]{0}', space=vmem, size = 0x2000, scoped, tag = 'input window, operand 0, single buffered']
    #allocation3 [shape = 's32[1]{0}', space=sflag, size = 0x4, scoped, tag = 'scoped memory for tpu_custom_call.1']
    #allocation4 [shape = 's32[1]{0}', space=sflag, size = 0x4, scoped, tag = 'scoped memory for tpu_custom_call.1']
    #allocation5 [shape = 'u8[16384]{0}', space=vmem, size = 0x4000, scoped, tag = 'input window, operand 1, single buffered']
    #allocation6 [shape = 's32[1]{0}', space=sflag, size = 0x4, scoped, tag = 'scoped memory for tpu_custom_call.1']
    #allocation7 [shape = 'u8[8192]{0}', space=vmem, size = 0x2000, scoped, tag = 'output window, operand 0, single buffered']
    %8 = vsyncpa [#allocation3], 0
    %9 = vsyncpa [#allocation6], 0
    %10 = vsyncpa [#allocation4], 0
    // Predicated region
    $region2: #{tpu_custom_call.1} parent=1 // pred_check
      _
    $region3: #{tpu_custom_call.1} parent=1 // pred_check_branch
      %12 = sbr.rel (0) target = $region5
    $region4: #{tpu_custom_call.1} parent=1 // pred_region
      %14 = vsyncadd [#allocation3], 0
      %s15 = sshll.u32 %s0, 4
      %s16 = int_to_ptr.hbm [resolvable:$true] %s15
      %s17 = sshll.u32 [#allocation2], 4
      %s18 = int_to_ptr.vmem [resolvable:$true] %s17
      %23 = dma.hbm_to_vmem [thread:$0]  %s16, 256, %s18, [#allocation3], 128, 128, 8
    $region5: #{tpu_custom_call.1} parent=1 // pred_fallthru
      _
    // Predicated region
    $region6: #{tpu_custom_call.1} parent=1 // pred_check
      _
    $region7: #{tpu_custom_call.1} parent=1 // pred_check_branch
      %25 = sbr.rel (0) target = $region9
    $region8: #{tpu_custom_call.1} parent=1 // pred_region
      %27 = vsyncadd [#allocation6], 0
      %s28 = sshll.u32 %s1, 4
      %s29 = int_to_ptr.hbm [resolvable:$true] %s28
      %s30 = sshll.u32 [#allocation5], 4
      %s31 = int_to_ptr.vmem [resolvable:$true] %s30
      %36 = dma.hbm_to_vmem [thread:$0]  %s29, 512, %s31, [#allocation6], 128, 128, 8
    $region9: #{tpu_custom_call.1} parent=1 // pred_fallthru
      _
    // Predicated region
    $region10: #{tpu_custom_call.1} parent=1 // pred_check
      _
    $region11: #{tpu_custom_call.1} parent=1 // pred_check_branch
      %38 = sbr.rel (0) target = $region13
    $region12: #{tpu_custom_call.1} parent=1 // pred_region
      _
    $region13: #{tpu_custom_call.1} parent=1 // pred_fallthru
      _
    // Predicated region
    $region14: #{tpu_custom_call.1} parent=1 // pred_check
      _
    $region15: #{tpu_custom_call.1} parent=1 // pred_check_branch
      %40 = sbr.rel (0) target = $region17
    $region16: #{tpu_custom_call.1} parent=1 // pred_region
      %42 = dma.done [#allocation3], 256
    $region17: #{tpu_custom_call.1} parent=1 // pred_fallthru
      _
    // Predicated region
    $region18: #{tpu_custom_call.1} parent=1 // pred_check
      _
    $region19: #{tpu_custom_call.1} parent=1 // pred_check_branch
      %44 = sbr.rel (0) target = $region21
    $region20: #{tpu_custom_call.1} parent=1 // pred_region
      %46 = dma.done [#allocation6], 512
    $region21: #{tpu_custom_call.1} parent=1 // pred_fallthru
      _
    %v47 = vld [vmem:[#allocation2] sm:$0xff]
    %v48 = vld [vmem:[#allocation2 + $0x8] sm:$0xff]
    %v49 = vld [vmem:[#allocation5] sm:$0xff]
    %v50 = vld [vmem:[#allocation5 + $0x8] sm:$0xff]
    %v51 = vld [vmem:[#allocation5 + $0x10] sm:$0xff]
    %v52 = vld [vmem:[#allocation5 + $0x18] sm:$0xff]
    %v53 = vld [vmem:[%s2] sm:$0x1]
    %v55 = vperm.slane %v53, 0
    %vm57 = vcmask 261120
    %v59 = vsel %vm57, %v47, 0
    %v62 = vsel %vm57, %v48, 0
    %64 = vmatpush.msra.mxu0 0.0
    %65 = vmatpush.msra.mxu0 0.0
    %66 = vmatpush.msra.mxu0 0.0
    %67 = vmatpush.msra.mxu0 0.0
    %68 = vmatpush.msra.mxu0 0.0
    %69 = vmatpush.msra.mxu0 0.0
    %70 = vmatpush.msra.mxu0 0.0
    %71 = vmatpush.msra.mxu0 0.0
    %72 = vmatpush.msra.mxu0 0.0
    %73 = vmatpush.msra.mxu0 0.0
    %74 = vmatpush.msra.mxu0 0.0
    %75 = vmatpush.msra.mxu0 0.0
    %76 = vmatpush.msra.mxu0 %v52
    %77 = vmatpush.msra.mxu0 %v51
    %78 = vmatpush.msra.mxu0 %v50
    %79 = vmatpush.msra.mxu0 %v49
    %80 = vmatmul.f32.gmra.mxu0 %v59
    %v81 = vpop.f32.mrf.mxu0
    %v82 = vadd.f32 %v55, %v81
    %83 = vmatmul.f32.gmra.mxu0 %v62
    %v84 = vpop.f32.mrf.mxu0
    %v85 = vadd.f32 %v55, %v84
    %86 = vdwg.mxu0
    %87 = vst.msk [vmem:[#allocation7] sm:$0xff] %vm57, %v82
    %88 = vst.msk [vmem:[#allocation7 + $0x8] sm:$0xff] %vm57, %v85
    // Predicated region
    $region22: #{tpu_custom_call.1} parent=1 // pred_check
      _
    $region23: #{tpu_custom_call.1} parent=1 // pred_check_branch
      %90 = sbr.rel (0) target = $region25
    $region24: #{tpu_custom_call.1} parent=1 // pred_region
      %92 = vsyncadd [#allocation4], 0
      %s93 = sshll.u32 [#allocation7], 4
      %s94 = int_to_ptr.vmem [resolvable:$true] %s93
      %s95 = sshll.u32 %s3, 4
      %s96 = int_to_ptr.hbm [resolvable:$true] %s95
      %101 = dma.vmem_to_hbm [thread:$0]  %s94, 256, %s96, [#allocation4], 128, 128, 8
    $region25: #{tpu_custom_call.1} parent=1 // pred_fallthru
      _
    // Predicated region
    $region26: #{tpu_custom_call.1} parent=1 // pred_check
      _
    $region27: #{tpu_custom_call.1} parent=1 // pred_check_branch
      %103 = sbr.rel (0) target = $region29
    $region28: #{tpu_custom_call.1} parent=1 // pred_region
      %105 = dma.done [#allocation4], 256
    $region29: #{tpu_custom_call.1} parent=1 // pred_fallthru
      _
    %106 = vsyncpa [#allocation3], 1
    %107 = vsyncpa [#allocation6], 1
    %108 = vsyncpa [#allocation4], 1

</llo_original>
